<compile_context>
chip_gen: v7x
topology: tpu7x:2x2x1
jax: 0.10.0
libtpu: 0.0.40
codegen_flags: <defaults>
</compile_context>

<pallas_src>
from functools import partial

import jax
import jax.numpy as jnp
from jax.experimental import pallas as pl
from jax.experimental.pallas import tpu as pltpu


# ----------------------------------------------------------------------------
# Kernel
# ----------------------------------------------------------------------------
def lstm_fc_kernel(x_ref, wih_ref, whh_ref, b_ref, wfc_ref, bfc_ref, out_ref,
                   pg_ref):
    """Whole-sequence LSTM recurrence + final Linear, fully VMEM resident.

    x_ref   : (T*Bp, I)   time-major flattened input (row = t*Bp + b)
    wih_ref : (I, 4H)     input->gates, packed gate order [i|f|g|o]
    whh_ref : (4H, 4H)    hidden->gates; only rows [H,2H) (the h block) nonzero
    b_ref   : (1, 4H)     combined bias (b_ih + b_hh)
    wfc_ref : (4H, Op)    fc weight; only rows [H,2H) nonzero, lanes padded
    bfc_ref : (1, Op)     fc bias (lane padded)
    out_ref : (Bp, Op)    output (wrapper slices [:B, :O])
    pg_ref  : (T*Bp, 4H)  VMEM scratch for the hoisted input projection
    """
    TB = x_ref.shape[0]
    G = whh_ref.shape[1]          # packed gate width = 4*H (one 128-lane group)
    H = G // 4
    Bp = out_ref.shape[0]
    T = TB // Bp

    # --- Input projection hoisted off the serial chain: one throughput matmul
    #     staged in VMEM scratch (bounds vreg live ranges across the unroll).
    pg_ref[...] = (
        jnp.dot(x_ref[...], wih_ref[...], preferred_element_type=jnp.float32)
        + b_ref[...])

    whh = whh_ref[...]            # (G, G): a single 128x128 MXU tile, resident.

    # Lane-iota mask selecting the tanh gate (g) block; loop invariant, hoisted.
    lane = jax.lax.broadcasted_iota(jnp.int32, (Bp, G), 1)
    is_g = jnp.logical_and(lane >= 2 * H, lane < 3 * H)

    # Real h/c live in lane block 1 (lanes [H,2H)); other blocks carry bounded
    # junk that only ever meets zero weight rows (whh / wfc) -> provably inert.
    h = jnp.zeros((Bp, G), jnp.float32)
    c = jnp.zeros((Bp, G), jnp.float32)

    # --- Statically unrolled recurrence (T known at trace time). ---
    for t in range(T):
        gates = pg_ref[t * Bp:(t + 1) * Bp, :] + jnp.dot(
            h, whh, preferred_element_type=jnp.float32)       # (Bp, G) [i|f|g|o]
        a = jnp.where(is_g, jnp.tanh(gates), jax.nn.sigmoid(gates))
        # Align gate blocks with the h/c block (block 1) via XLU rotations.
        # The pairings are direction-symmetric, so roll sign does not matter:
        #   block1 of a                       -> sigmoid(f)
        #   block1 of roll(a,H)*roll(a,3H)    -> sigmoid(i)*tanh(g)
        #   block1 of roll(a,2H)              -> sigmoid(o)
        c = a * c + pltpu.roll(a, H, 1) * pltpu.roll(a, 3 * H, 1)
        h = pltpu.roll(a, 2 * H, 1) * jnp.tanh(c)

    # --- Final Linear on the last hidden state (lane-dense padded store). ---
    out_ref[...] = (
        jnp.dot(h, wfc_ref[...], preferred_element_type=jnp.float32)
        + bfc_ref[...])


# ----------------------------------------------------------------------------
# Wrapper
# ----------------------------------------------------------------------------
@partial(jax.jit, static_argnames=("out_size",))
def lstm_state_estimation(x_btI, kparams, out_size):
    """x_btI: (B, T, I) batch_first, like the PyTorch module. Returns (B, O)."""
    B, T, I = x_btI.shape
    G = kparams["whh_p"].shape[0]        # 4*H
    Op = kparams["wfc_p"].shape[1]
    Bp = ((B + 7) // 8) * 8              # sublane-pad batch -> unmasked ops

    x = x_btI.astype(jnp.float32)
    if Bp != B:
        x = jnp.pad(x, ((0, Bp - B), (0, 0), (0, 0)))
    # Time-major flatten (row = t*Bp + b): per-step pregate reads become
    # static, 8-sublane-aligned contiguous slices inside the kernel.
    x_tflat = jnp.transpose(x, (1, 0, 2)).reshape(T * Bp, I)

    vmem = pl.BlockSpec(memory_space=pltpu.MemorySpace.VMEM)
    out_p = pl.pallas_call(
        lstm_fc_kernel,
        out_shape=jax.ShapeDtypeStruct((Bp, Op), jnp.float32),
        in_specs=[vmem] * 6,
        out_specs=vmem,
        scratch_shapes=[pltpu.VMEM((T * Bp, G), jnp.float32)],
        # Footprint is well under 1 MiB; default scoped VMEM limit is fine on
        # v5e/v6e/v7x.  At larger B*T, grid over time chunks / batch and set
        # pltpu.CompilerParams(vmem_limit_bytes=...).
    )(
        x_tflat,
        kparams["wih_p"],
        kparams["whh_p"],
        kparams["b_p"],
        kparams["wfc_p"],
        kparams["bfc_p"],
    )
    return out_p[:B, :out_size]


# ----------------------------------------------------------------------------
# Parameter init (matches the PyTorch module's init_weights) + kernel prep
# ----------------------------------------------------------------------------
def xavier_uniform(key, shape):
    # PyTorch xavier_uniform_ for 2-D weights: fan_out = shape[0], fan_in = shape[1].
    fan_out, fan_in = shape
    bound = (6.0 / (fan_in + fan_out)) ** 0.5
    return jax.random.uniform(key, shape, jnp.float32, -bound, bound)


def init_params(key, input_size, hidden_size, output_size):
    k1, k2, k3 = jax.random.split(key, 3)
    # PyTorch layout: weight_ih_l0 (4H, I), weight_hh_l0 (4H, H), fc.weight (O, H)
    return {
        "w_ih": xavier_uniform(k1, (4 * hidden_size, input_size)),
        "w_hh": xavier_uniform(k2, (4 * hidden_size, hidden_size)),
        "w_fc": xavier_uniform(k3, (output_size, hidden_size)),
        "b_ih": jnp.zeros((4 * hidden_size,), jnp.float32),
        "b_hh": jnp.zeros((4 * hidden_size,), jnp.float32),
        "b_fc": jnp.zeros((output_size,), jnp.float32),
    }


def prepare_kernel_params(params, hidden_size):
    """Pack gates into exactly 4*H lanes; place the real h/c block at block 1.

    Rows of whh/wfc outside lanes [H,2H) are zero, so the junk lanes of the
    in-kernel hidden state never leak into real values.
    """
    H = hidden_size
    G = 4 * H
    assert G % 128 == 0, "packed-gate layout needs 4*hidden_size % 128 == 0"
    w_ih, w_hh, w_fc = params["w_ih"], params["w_hh"], params["w_fc"]
    O = w_fc.shape[0]
    Op = ((O + 127) // 128) * 128

    # PyTorch gate order [i, f, g, o] stays contiguous at lane offsets
    # 0 / H / 2H / 3H, so the packed input projection is a plain transpose.
    wih_p = w_ih.T.astype(jnp.float32)                                   # (I, G)
    b_p = (params["b_ih"] + params["b_hh"]).reshape(1, G).astype(jnp.float32)
    # Recurrent weight: real hidden inputs occupy rows [H, 2H) (block 1).
    whh_p = jnp.zeros((G, G), jnp.float32).at[H:2 * H, :].set(
        w_hh.T.astype(jnp.float32))
    # FC weight / bias: rows outside the h block zero; lanes padded to Op.
    wfc_p = jnp.zeros((G, Op), jnp.float32).at[H:2 * H, :O].set(
        w_fc.T.astype(jnp.float32))
    bfc_p = jnp.zeros((1, Op), jnp.float32).at[0, :O].set(
        params["b_fc"].astype(jnp.float32))
    return {"wih_p": wih_p, "whh_p": whh_p, "b_p": b_p,
            "wfc_p": wfc_p, "bfc_p": bfc_p}


# ----------------------------------------------------------------------------
# Pure-JAX reference (mirrors torch.nn.LSTM + Linear, znorm=None)
# ----------------------------------------------------------------------------
def reference_forward(x_btI, params):
    B, T, _ = x_btI.shape
    H = params["w_hh"].shape[1]
    wih_t = params["w_ih"].T            # (I, 4H)
    whh_t = params["w_hh"].T            # (H, 4H)
    b = (params["b_ih"] + params["b_hh"])[None, :]
    h = jnp.zeros((B, H), jnp.float32)
    c = jnp.zeros((B, H), jnp.float32)
    for t in range(T):
        gates = x_btI[:, t, :] @ wih_t + h @ whh_t + b
        i_g = jax.nn.sigmoid(gates[:, 0 * H:1 * H])
        f_g = jax.nn.sigmoid(gates[:, 1 * H:2 * H])
        g_g = jnp.tanh(gates[:, 2 * H:3 * H])
        o_g = jax.nn.sigmoid(gates[:, 3 * H:4 * H])
        c = f_g * c + i_g * g_g
        h = o_g * jnp.tanh(c)
    return h @ params["w_fc"].T + params["b_fc"][None, :]


if __name__ == "__main__":
    B, T, I, H, O = 2, 8, 16, 32, 8

    key = jax.random.PRNGKey(0)
    k_x, k_p = jax.random.split(key)
    x = jax.random.normal(k_x, (B, T, I), jnp.float32)
    params = init_params(k_p, I, H, O)
    kparams = prepare_kernel_params(params, H)

    out = lstm_state_estimation(x, kparams, out_size=O)
    out = jax.block_until_ready(out)

    ref = reference_forward(x, params)
    assert out.shape == (B, O)
    assert jnp.allclose(out, ref, atol=1e-4, rtol=1e-4)

    print("KERNEL_OK")
</pallas_src>

<mosaic_0001>
module attributes {stable_mosaic.version = 11 : i64} {
  func.func @lstm_fc_kernel(%arg0: memref<64x16xf32, #tpu.memory_space<vmem>>, %arg1: memref<16x128xf32, #tpu.memory_space<vmem>>, %arg2: memref<128x128xf32, #tpu.memory_space<vmem>>, %arg3: memref<1x128xf32, #tpu.memory_space<vmem>>, %arg4: memref<128x128xf32, #tpu.memory_space<vmem>>, %arg5: memref<1x128xf32, #tpu.memory_space<vmem>>, %arg6: memref<8x128xf32, #tpu.memory_space<vmem>>, %arg7: memref<64x128xf32, #tpu.memory_space<vmem>>) attributes {dimension_semantics = [], scalar_prefetch = 0 : i64, scratch_operands = 1 : i64, tpu.core_type = #tpu.core_type<tc>} {
    %c0 = arith.constant 0 : index
    %c0_0 = arith.constant 0 : index
    %0 = vector.load %arg0[%c0, %c0_0] : memref<64x16xf32, #tpu.memory_space<vmem>>, vector<64x16xf32>
    %c0_1 = arith.constant 0 : index
    %c0_2 = arith.constant 0 : index
    %1 = vector.load %arg1[%c0_1, %c0_2] : memref<16x128xf32, #tpu.memory_space<vmem>>, vector<16x128xf32>
    %cst = arith.constant dense<0.000000e+00> : vector<64x128xf32>
    %2 = tpu.matmul %0, %1, %cst {dimension_numbers = #tpu.dot_dimension_numbers<[1], [0], [0], [1], [0, 0, 1, 1], [], []>} : vector<64x16xf32>, vector<16x128xf32>, vector<64x128xf32> -> vector<64x128xf32>
    %c0_3 = arith.constant 0 : index
    %c0_4 = arith.constant 0 : index
    %3 = vector.load %arg3[%c0_3, %c0_4] : memref<1x128xf32, #tpu.memory_space<vmem>>, vector<1x128xf32>
    %4 = vector.broadcast %3 : vector<1x128xf32> to vector<64x128xf32>
    %5 = arith.addf %2, %4 : vector<64x128xf32>
    %c0_5 = arith.constant 0 : index
    %c0_6 = arith.constant 0 : index
    %6 = vector.load %arg7[%c0_5, %c0_6] : memref<64x128xf32, #tpu.memory_space<vmem>>, vector<64x128xf32>
    tpu.vector_store %arg7[%c0_5, %c0_6], %5 {strides = array<i32>} : memref<64x128xf32, #tpu.memory_space<vmem>>, vector<64x128xf32>,
    %c0_7 = arith.constant 0 : index
    %c0_8 = arith.constant 0 : index
    %7 = vector.load %arg2[%c0_7, %c0_8] : memref<128x128xf32, #tpu.memory_space<vmem>>, vector<128x128xf32>
    %8 = tpu.iota {dimensions = array<i32: 1>} : vector<8x128xi32>
    %c64_i32 = arith.constant 64 : i32
    %9 = vector.broadcast %c64_i32 : i32 to vector<8x128xi32>
    %10 = arith.cmpi sge, %8, %9 : vector<8x128xi32>
    %c96_i32 = arith.constant 96 : i32
    %11 = vector.broadcast %c96_i32 : i32 to vector<8x128xi32>
    %12 = arith.cmpi slt, %8, %11 : vector<8x128xi32>
    %13 = arith.andi %10, %12 : vector<8x128xi1>
    %cst_9 = arith.constant 0.000000e+00 : f32
    %14 = vector.broadcast %cst_9 : f32 to vector<8x128xf32>
    %cst_10 = arith.constant 0.000000e+00 : f32
    %15 = vector.broadcast %cst_10 : f32 to vector<8x128xf32>
    %c0_11 = arith.constant 0 : index
    %c0_12 = arith.constant 0 : index
    %16 = vector.load %arg7[%c0_11, %c0_12] : memref<64x128xf32, #tpu.memory_space<vmem>>, vector<8x128xf32>
    %cst_13 = arith.constant dense<0.000000e+00> : vector<8x128xf32>
    %17 = tpu.matmul %14, %7, %cst_13 {dimension_numbers = #tpu.dot_dimension_numbers<[1], [0], [0], [1], [0, 0, 1, 1], [], []>} : vector<8x128xf32>, vector<128x128xf32>, vector<8x128xf32> -> vector<8x128xf32>
    %18 = arith.addf %16, %17 : vector<8x128xf32>
    %19 = math.tanh %18 : vector<8x128xf32>
    %20 = arith.negf %18 : vector<8x128xf32>
    %21 = math.exp %20 : vector<8x128xf32>
    %cst_14 = arith.constant 1.000000e+00 : f32
    %22 = vector.broadcast %cst_14 : f32 to vector<8x128xf32>
    %23 = arith.addf %22, %21 : vector<8x128xf32>
    %24 = arith.divf %22, %23 : vector<8x128xf32>
    %25 = arith.select %13, %19, %24 : vector<8x128xi1>, vector<8x128xf32>
    %26 = arith.mulf %25, %15 : vector<8x128xf32>
    %c32_i32 = arith.constant 32 : i32
    %27 = tpu.dynamic_rotate %25 by %c32_i32 dim 1 : vector<8x128xf32>, i32 -> vector<8x128xf32>
    %c96_i32_15 = arith.constant 96 : i32
    %28 = tpu.dynamic_rotate %25 by %c96_i32_15 dim 1 : vector<8x128xf32>, i32 -> vector<8x128xf32>
    %29 = arith.mulf %27, %28 : vector<8x128xf32>
    %30 = arith.addf %26, %29 : vector<8x128xf32>
    %c64_i32_16 = arith.constant 64 : i32
    %31 = tpu.dynamic_rotate %25 by %c64_i32_16 dim 1 : vector<8x128xf32>, i32 -> vector<8x128xf32>
    %32 = math.tanh %30 : vector<8x128xf32>
    %33 = arith.mulf %31, %32 : vector<8x128xf32>
    %c8 = arith.constant 8 : index
    %c0_17 = arith.constant 0 : index
    %34 = vector.load %arg7[%c8, %c0_17] : memref<64x128xf32, #tpu.memory_space<vmem>>, vector<8x128xf32>
    %cst_18 = arith.constant dense<0.000000e+00> : vector<8x128xf32>
    %35 = tpu.matmul %33, %7, %cst_18 {dimension_numbers = #tpu.dot_dimension_numbers<[1], [0], [0], [1], [0, 0, 1, 1], [], []>} : vector<8x128xf32>, vector<128x128xf32>, vector<8x128xf32> -> vector<8x128xf32>
    %36 = arith.addf %34, %35 : vector<8x128xf32>
    %37 = math.tanh %36 : vector<8x128xf32>
    %38 = arith.negf %36 : vector<8x128xf32>
    %39 = math.exp %38 : vector<8x128xf32>
    %cst_19 = arith.constant 1.000000e+00 : f32
    %40 = vector.broadcast %cst_19 : f32 to vector<8x128xf32>
    %41 = arith.addf %40, %39 : vector<8x128xf32>
    %42 = arith.divf %40, %41 : vector<8x128xf32>
    %43 = arith.select %13, %37, %42 : vector<8x128xi1>, vector<8x128xf32>
    %44 = arith.mulf %43, %30 : vector<8x128xf32>
    %c32_i32_20 = arith.constant 32 : i32
    %45 = tpu.dynamic_rotate %43 by %c32_i32_20 dim 1 : vector<8x128xf32>, i32 -> vector<8x128xf32>
    %c96_i32_21 = arith.constant 96 : i32
    %46 = tpu.dynamic_rotate %43 by %c96_i32_21 dim 1 : vector<8x128xf32>, i32 -> vector<8x128xf32>
    %47 = arith.mulf %45, %46 : vector<8x128xf32>
    %48 = arith.addf %44, %47 : vector<8x128xf32>
    %c64_i32_22 = arith.constant 64 : i32
    %49 = tpu.dynamic_rotate %43 by %c64_i32_22 dim 1 : vector<8x128xf32>, i32 -> vector<8x128xf32>
    %50 = math.tanh %48 : vector<8x128xf32>
    %51 = arith.mulf %49, %50 : vector<8x128xf32>
    %c16 = arith.constant 16 : index
    %c0_23 = arith.constant 0 : index
    %52 = vector.load %arg7[%c16, %c0_23] : memref<64x128xf32, #tpu.memory_space<vmem>>, vector<8x128xf32>
    %cst_24 = arith.constant dense<0.000000e+00> : vector<8x128xf32>
    %53 = tpu.matmul %51, %7, %cst_24 {dimension_numbers = #tpu.dot_dimension_numbers<[1], [0], [0], [1], [0, 0, 1, 1], [], []>} : vector<8x128xf32>, vector<128x128xf32>, vector<8x128xf32> -> vector<8x128xf32>
    %54 = arith.addf %52, %53 : vector<8x128xf32>
    %55 = math.tanh %54 : vector<8x128xf32>
    %56 = arith.negf %54 : vector<8x128xf32>
    %57 = math.exp %56 : vector<8x128xf32>
    %cst_25 = arith.constant 1.000000e+00 : f32
    %58 = vector.broadcast %cst_25 : f32 to vector<8x128xf32>
    %59 = arith.addf %58, %57 : vector<8x128xf32>
    %60 = arith.divf %58, %59 : vector<8x128xf32>
    %61 = arith.select %13, %55, %60 : vector<8x128xi1>, vector<8x128xf32>
    %62 = arith.mulf %61, %48 : vector<8x128xf32>
    %c32_i32_26 = arith.constant 32 : i32
    %63 = tpu.dynamic_rotate %61 by %c32_i32_26 dim 1 : vector<8x128xf32>, i32 -> vector<8x128xf32>
    %c96_i32_27 = arith.constant 96 : i32
    %64 = tpu.dynamic_rotate %61 by %c96_i32_27 dim 1 : vector<8x128xf32>, i32 -> vector<8x128xf32>
    %65 = arith.mulf %63, %64 : vector<8x128xf32>
    %66 = arith.addf %62, %65 : vector<8x128xf32>
    %c64_i32_28 = arith.constant 64 : i32
    %67 = tpu.dynamic_rotate %61 by %c64_i32_28 dim 1 : vector<8x128xf32>, i32 -> vector<8x128xf32>
    %68 = math.tanh %66 : vector<8x128xf32>
    %69 = arith.mulf %67, %68 : vector<8x128xf32>
    %c24 = arith.constant 24 : index
    %c0_29 = arith.constant 0 : index
    %70 = vector.load %arg7[%c24, %c0_29] : memref<64x128xf32, #tpu.memory_space<vmem>>, vector<8x128xf32>
    %cst_30 = arith.constant dense<0.000000e+00> : vector<8x128xf32>
    %71 = tpu.matmul %69, %7, %cst_30 {dimension_numbers = #tpu.dot_dimension_numbers<[1], [0], [0], [1], [0, 0, 1, 1], [], []>} : vector<8x128xf32>, vector<128x128xf32>, vector<8x128xf32> -> vector<8x128xf32>
    %72 = arith.addf %70, %71 : vector<8x128xf32>
    %73 = math.tanh %72 : vector<8x128xf32>
    %74 = arith.negf %72 : vector<8x128xf32>
    %75 = math.exp %74 : vector<8x128xf32>
    %cst_31 = arith.constant 1.000000e+00 : f32
    %76 = vector.broadcast %cst_31 : f32 to vector<8x128xf32>
    %77 = arith.addf %76, %75 : vector<8x128xf32>
    %78 = arith.divf %76, %77 : vector<8x128xf32>
    %79 = arith.select %13, %73, %78 : vector<8x128xi1>, vector<8x128xf32>
    %80 = arith.mulf %79, %66 : vector<8x128xf32>
    %c32_i32_32 = arith.constant 32 : i32
    %81 = tpu.dynamic_rotate %79 by %c32_i32_32 dim 1 : vector<8x128xf32>, i32 -> vector<8x128xf32>
    %c96_i32_33 = arith.constant 96 : i32
    %82 = tpu.dynamic_rotate %79 by %c96_i32_33 dim 1 : vector<8x128xf32>, i32 -> vector<8x128xf32>
    %83 = arith.mulf %81, %82 : vector<8x128xf32>
    %84 = arith.addf %80, %83 : vector<8x128xf32>
    %c64_i32_34 = arith.constant 64 : i32
    %85 = tpu.dynamic_rotate %79 by %c64_i32_34 dim 1 : vector<8x128xf32>, i32 -> vector<8x128xf32>
    %86 = math.tanh %84 : vector<8x128xf32>
    %87 = arith.mulf %85, %86 : vector<8x128xf32>
    %c32 = arith.constant 32 : index
    %c0_35 = arith.constant 0 : index
    %88 = vector.load %arg7[%c32, %c0_35] : memref<64x128xf32, #tpu.memory_space<vmem>>, vector<8x128xf32>
    %cst_36 = arith.constant dense<0.000000e+00> : vector<8x128xf32>
    %89 = tpu.matmul %87, %7, %cst_36 {dimension_numbers = #tpu.dot_dimension_numbers<[1], [0], [0], [1], [0, 0, 1, 1], [], []>} : vector<8x128xf32>, vector<128x128xf32>, vector<8x128xf32> -> vector<8x128xf32>
    %90 = arith.addf %88, %89 : vector<8x128xf32>
    %91 = math.tanh %90 : vector<8x128xf32>
    %92 = arith.negf %90 : vector<8x128xf32>
    %93 = math.exp %92 : vector<8x128xf32>
    %cst_37 = arith.constant 1.000000e+00 : f32
    %94 = vector.broadcast %cst_37 : f32 to vector<8x128xf32>
    %95 = arith.addf %94, %93 : vector<8x128xf32>
    %96 = arith.divf %94, %95 : vector<8x128xf32>
    %97 = arith.select %13, %91, %96 : vector<8x128xi1>, vector<8x128xf32>
    %98 = arith.mulf %97, %84 : vector<8x128xf32>
    %c32_i32_38 = arith.constant 32 : i32
    %99 = tpu.dynamic_rotate %97 by %c32_i32_38 dim 1 : vector<8x128xf32>, i32 -> vector<8x128xf32>
    %c96_i32_39 = arith.constant 96 : i32
    %100 = tpu.dynamic_rotate %97 by %c96_i32_39 dim 1 : vector<8x128xf32>, i32 -> vector<8x128xf32>
    %101 = arith.mulf %99, %100 : vector<8x128xf32>
    %102 = arith.addf %98, %101 : vector<8x128xf32>
    %c64_i32_40 = arith.constant 64 : i32
    %103 = tpu.dynamic_rotate %97 by %c64_i32_40 dim 1 : vector<8x128xf32>, i32 -> vector<8x128xf32>
    %104 = math.tanh %102 : vector<8x128xf32>
    %105 = arith.mulf %103, %104 : vector<8x128xf32>
    %c40 = arith.constant 40 : index
    %c0_41 = arith.constant 0 : index
    %106 = vector.load %arg7[%c40, %c0_41] : memref<64x128xf32, #tpu.memory_space<vmem>>, vector<8x128xf32>
    %cst_42 = arith.constant dense<0.000000e+00> : vector<8x128xf32>
    %107 = tpu.matmul %105, %7, %cst_42 {dimension_numbers = #tpu.dot_dimension_numbers<[1], [0], [0], [1], [0, 0, 1, 1], [], []>} : vector<8x128xf32>, vector<128x128xf32>, vector<8x128xf32> -> vector<8x128xf32>
    %108 = arith.addf %106, %107 : vector<8x128xf32>
    %109 = math.tanh %108 : vector<8x128xf32>
    %110 = arith.negf %108 : vector<8x128xf32>
    %111 = math.exp %110 : vector<8x128xf32>
    %cst_43 = arith.constant 1.000000e+00 : f32
    %112 = vector.broadcast %cst_43 : f32 to vector<8x128xf32>
    %113 = arith.addf %112, %111 : vector<8x128xf32>
    %114 = arith.divf %112, %113 : vector<8x128xf32>
    %115 = arith.select %13, %109, %114 : vector<8x128xi1>, vector<8x128xf32>
    %116 = arith.mulf %115, %102 : vector<8x128xf32>
    %c32_i32_44 = arith.constant 32 : i32
    %117 = tpu.dynamic_rotate %115 by %c32_i32_44 dim 1 : vector<8x128xf32>, i32 -> vector<8x128xf32>
    %c96_i32_45 = arith.constant 96 : i32
    %118 = tpu.dynamic_rotate %115 by %c96_i32_45 dim 1 : vector<8x128xf32>, i32 -> vector<8x128xf32>
    %119 = arith.mulf %117, %118 : vector<8x128xf32>
    %120 = arith.addf %116, %119 : vector<8x128xf32>
    %c64_i32_46 = arith.constant 64 : i32
    %121 = tpu.dynamic_rotate %115 by %c64_i32_46 dim 1 : vector<8x128xf32>, i32 -> vector<8x128xf32>
    %122 = math.tanh %120 : vector<8x128xf32>
    %123 = arith.mulf %121, %122 : vector<8x128xf32>
    %c48 = arith.constant 48 : index
    %c0_47 = arith.constant 0 : index
    %124 = vector.load %arg7[%c48, %c0_47] : memref<64x128xf32, #tpu.memory_space<vmem>>, vector<8x128xf32>
    %cst_48 = arith.constant dense<0.000000e+00> : vector<8x128xf32>
    %125 = tpu.matmul %123, %7, %cst_48 {dimension_numbers = #tpu.dot_dimension_numbers<[1], [0], [0], [1], [0, 0, 1, 1], [], []>} : vector<8x128xf32>, vector<128x128xf32>, vector<8x128xf32> -> vector<8x128xf32>
    %126 = arith.addf %124, %125 : vector<8x128xf32>
    %127 = math.tanh %126 : vector<8x128xf32>
    %128 = arith.negf %126 : vector<8x128xf32>
    %129 = math.exp %128 : vector<8x128xf32>
    %cst_49 = arith.constant 1.000000e+00 : f32
    %130 = vector.broadcast %cst_49 : f32 to vector<8x128xf32>
    %131 = arith.addf %130, %129 : vector<8x128xf32>
    %132 = arith.divf %130, %131 : vector<8x128xf32>
    %133 = arith.select %13, %127, %132 : vector<8x128xi1>, vector<8x128xf32>
    %134 = arith.mulf %133, %120 : vector<8x128xf32>
    %c32_i32_50 = arith.constant 32 : i32
    %135 = tpu.dynamic_rotate %133 by %c32_i32_50 dim 1 : vector<8x128xf32>, i32 -> vector<8x128xf32>
    %c96_i32_51 = arith.constant 96 : i32
    %136 = tpu.dynamic_rotate %133 by %c96_i32_51 dim 1 : vector<8x128xf32>, i32 -> vector<8x128xf32>
    %137 = arith.mulf %135, %136 : vector<8x128xf32>
    %138 = arith.addf %134, %137 : vector<8x128xf32>
    %c64_i32_52 = arith.constant 64 : i32
    %139 = tpu.dynamic_rotate %133 by %c64_i32_52 dim 1 : vector<8x128xf32>, i32 -> vector<8x128xf32>
    %140 = math.tanh %138 : vector<8x128xf32>
    %141 = arith.mulf %139, %140 : vector<8x128xf32>
    %c56 = arith.constant 56 : index
    %c0_53 = arith.constant 0 : index
    %142 = vector.load %arg7[%c56, %c0_53] : memref<64x128xf32, #tpu.memory_space<vmem>>, vector<8x128xf32>
    %cst_54 = arith.constant dense<0.000000e+00> : vector<8x128xf32>
    %143 = tpu.matmul %141, %7, %cst_54 {dimension_numbers = #tpu.dot_dimension_numbers<[1], [0], [0], [1], [0, 0, 1, 1], [], []>} : vector<8x128xf32>, vector<128x128xf32>, vector<8x128xf32> -> vector<8x128xf32>
    %144 = arith.addf %142, %143 : vector<8x128xf32>
    %145 = math.tanh %144 : vector<8x128xf32>
    %146 = arith.negf %144 : vector<8x128xf32>
    %147 = math.exp %146 : vector<8x128xf32>
    %cst_55 = arith.constant 1.000000e+00 : f32
    %148 = vector.broadcast %cst_55 : f32 to vector<8x128xf32>
    %149 = arith.addf %148, %147 : vector<8x128xf32>
    %150 = arith.divf %148, %149 : vector<8x128xf32>
    %151 = arith.select %13, %145, %150 : vector<8x128xi1>, vector<8x128xf32>
    %152 = arith.mulf %151, %138 : vector<8x128xf32>
    %c32_i32_56 = arith.constant 32 : i32
    %153 = tpu.dynamic_rotate %151 by %c32_i32_56 dim 1 : vector<8x128xf32>, i32 -> vector<8x128xf32>
    %c96_i32_57 = arith.constant 96 : i32
    %154 = tpu.dynamic_rotate %151 by %c96_i32_57 dim 1 : vector<8x128xf32>, i32 -> vector<8x128xf32>
    %155 = arith.mulf %153, %154 : vector<8x128xf32>
    %156 = arith.addf %152, %155 : vector<8x128xf32>
    %c64_i32_58 = arith.constant 64 : i32
    %157 = tpu.dynamic_rotate %151 by %c64_i32_58 dim 1 : vector<8x128xf32>, i32 -> vector<8x128xf32>
    %158 = math.tanh %156 : vector<8x128xf32>
    %159 = arith.mulf %157, %158 : vector<8x128xf32>
    %c0_59 = arith.constant 0 : index
    %c0_60 = arith.constant 0 : index
    %160 = vector.load %arg4[%c0_59, %c0_60] : memref<128x128xf32, #tpu.memory_space<vmem>>, vector<128x128xf32>
    %cst_61 = arith.constant dense<0.000000e+00> : vector<8x128xf32>
    %161 = tpu.matmul %159, %160, %cst_61 {dimension_numbers = #tpu.dot_dimension_numbers<[1], [0], [0], [1], [0, 0, 1, 1], [], []>} : vector<8x128xf32>, vector<128x128xf32>, vector<8x128xf32> -> vector<8x128xf32>
    %c0_62 = arith.constant 0 : index
    %c0_63 = arith.constant 0 : index
    %162 = vector.load %arg5[%c0_62, %c0_63] : memref<1x128xf32, #tpu.memory_space<vmem>>, vector<1x128xf32>
    %163 = vector.broadcast %162 : vector<1x128xf32> to vector<8x128xf32>
    %164 = arith.addf %161, %163 : vector<8x128xf32>
    %c0_64 = arith.constant 0 : index
    %c0_65 = arith.constant 0 : index
    %165 = vector.load %arg6[%c0_64, %c0_65] : memref<8x128xf32, #tpu.memory_space<vmem>>, vector<8x128xf32>
    tpu.vector_store %arg6[%c0_64, %c0_65], %164 {strides = array<i32>} : memref<8x128xf32, #tpu.memory_space<vmem>>, vector<8x128xf32>,
    return
  }
}

</mosaic_0001>

<llo_original>
// kernel: lstm_state_estimation.1
$region0: #{lstm_state_estimation.1}
  #allocation0 [shape = 'u32[]', space=smem, size = 0x4, offset = 0x4, fixed_abs, tag = 'smem constant byte address 0x4 - core index']
  #allocation1 [shape = 'u32[144,128]{1,0:T(1,128)}', space=vmem, size = 0x12000, scoped, tag = 'internal scratch']
  #allocation2 [shape = 'f32[64,128]{1,0:T(8,128)}', space=vmem, size = 0x8000, scoped, tag = 'scratch operand']
  %s0 = inlined_call_operand.vmem [shape: f32[64,16], index: 0, kind: input, shape index: {}]
  %s1 = inlined_call_operand.vmem [shape: f32[16,128], index: 1, kind: input, shape index: {}]
  %s2 = inlined_call_operand.vmem [shape: f32[128,128], index: 2, kind: input, shape index: {}]
  %s3 = inlined_call_operand.vmem [shape: f32[1,128], index: 3, kind: input, shape index: {}]
  %s4 = inlined_call_operand.hbm [shape: f32[128,128], index: 4, kind: input, shape index: {}]
  %s5 = inlined_call_operand.vmem [shape: f32[1,128], index: 5, kind: input, shape index: {}]
  %s6 = inlined_call_operand.vmem [shape: f32[8,128], index: 6, kind: output, shape index: {}]
  %s7 = sld [smem:[#allocation0]]
  $region38: #{lstm_state_estimation.1} parent=0
    _
  %s9 = ssub.s32 1, %s7
  %s10 = scalar_select 0, %s9, %s7
  $region1: #{lstm_state_estimation.1} parent=0
    #allocation3 [shape = 'u8[65536]{0}', space=vmem, size = 0x10000, scoped, tag = 'input window, operand 4, single buffered']
    #allocation4 [shape = 's32[1]{0}', space=sflag, size = 0x4, scoped, tag = 'scoped memory for lstm_state_estimation.1']
    %11 = vsyncpa [#allocation4], 0
    // Predicated region
    $region2: #{lstm_state_estimation.1} parent=1 // pred_check
      _
    $region3: #{lstm_state_estimation.1} parent=1 // pred_check_branch
      %13 = sbr.rel (0) target = $region5
    $region4: #{lstm_state_estimation.1} parent=1 // pred_region
      _
    $region5: #{lstm_state_estimation.1} parent=1 // pred_fallthru
      _
    // Predicated region
    $region6: #{lstm_state_estimation.1} parent=1 // pred_check
      _
    $region7: #{lstm_state_estimation.1} parent=1 // pred_check_branch
      %15 = sbr.rel (0) target = $region9
    $region8: #{lstm_state_estimation.1} parent=1 // pred_region
      _
    $region9: #{lstm_state_estimation.1} parent=1 // pred_fallthru
      _
    // Predicated region
    $region10: #{lstm_state_estimation.1} parent=1 // pred_check
      _
    $region11: #{lstm_state_estimation.1} parent=1 // pred_check_branch
      %17 = sbr.rel (0) target = $region13
    $region12: #{lstm_state_estimation.1} parent=1 // pred_region
      _
    $region13: #{lstm_state_estimation.1} parent=1 // pred_fallthru
      _
    // Predicated region
    $region14: #{lstm_state_estimation.1} parent=1 // pred_check
      _
    $region15: #{lstm_state_estimation.1} parent=1 // pred_check_branch
      %19 = sbr.rel (0) target = $region17
    $region16: #{lstm_state_estimation.1} parent=1 // pred_region
      _
    $region17: #{lstm_state_estimation.1} parent=1 // pred_fallthru
      _
    // Predicated region
    $region18: #{lstm_state_estimation.1} parent=1 // pred_check
      _
    $region19: #{lstm_state_estimation.1} parent=1 // pred_check_branch
      %21 = sbr.rel (0) target = $region21
    $region20: #{lstm_state_estimation.1} parent=1 // pred_region
      %s23 = ssub.s32 2048, 2048
      %24 = vsyncadd [#allocation4], %s23
      %s25 = sshll.u32 [#allocation3], 4
      %s26 = int_to_ptr.vmem [resolvable:$true] %s25
      %31 = dma.hbm_to_vmem [thread:$0]  %s4, 2048, %s26, [#allocation4], 128, 128, 8
    $region21: #{lstm_state_estimation.1} parent=1 // pred_fallthru
      _
    // Predicated region
    $region22: #{lstm_state_estimation.1} parent=1 // pred_check
      _
    $region23: #{lstm_state_estimation.1} parent=1 // pred_check_branch
      %33 = sbr.rel (0) target = $region25
    $region24: #{lstm_state_estimation.1} parent=1 // pred_region
      _
    $region25: #{lstm_state_estimation.1} parent=1 // pred_fallthru
      _
    // Predicated region
    $region26: #{lstm_state_estimation.1} parent=1 // pred_check
      _
    $region27: #{lstm_state_estimation.1} parent=1 // pred_check_branch
      %35 = sbr.rel (0) target = $region29
    $region28: #{lstm_state_estimation.1} parent=1 // pred_region
      %36 = dma.done [#allocation4], 2048
    $region29: #{lstm_state_estimation.1} parent=1 // pred_fallthru
      _
    %v37 = vld [vmem:[%s0] sm:$0xff]
    %v38 = vld [vmem:[%s0 + $0x8] sm:$0xff]
    %v39 = vld [vmem:[%s0 + $0x10] sm:$0xff]
    %v40 = vld [vmem:[%s0 + $0x18] sm:$0xff]
    %v41 = vld [vmem:[%s0 + $0x20] sm:$0xff]
    %v42 = vld [vmem:[%s0 + $0x28] sm:$0xff]
    %v43 = vld [vmem:[%s0 + $0x30] sm:$0xff]
    %v44 = vld [vmem:[%s0 + $0x38] sm:$0xff]
    %v45 = vld [vmem:[%s1] sm:$0xff]
    %v46 = vld [vmem:[%s1 + $0x8] sm:$0xff]
    %v47 = vld [vmem:[%s3] sm:$0x1]
    %v49 = vlaneseq
    %v50 = vshrl.u32 %v49, 7
    %v51 = vsub.s32 0, %v50
    %v52 = vrot.slane %v47, %v51
    %vm54 = vcmask 130048
    %v56 = vsel %vm54, %v37, 0
    %v59 = vsel %vm54, %v38, 0
    %v62 = vsel %vm54, %v39, 0
    %v65 = vsel %vm54, %v40, 0
    %v68 = vsel %vm54, %v41, 0
    %v71 = vsel %vm54, %v42, 0
    %v74 = vsel %vm54, %v43, 0
    %v77 = vsel %vm54, %v44, 0
    %79 = vmatprep.subr.mxu0 0.0
    %80 = vmatpush1.msra.mxu0 %v45
    %81 = vmatprep.subr.mxu0 0.0
    %82 = vmatpush1.msra.mxu0 %v46
    %83 = vmatprep.subr.mxu0 0.0
    %84 = vmatpush1.msra.mxu0 0.0
    %85 = vmatprep.subr.mxu0 0.0
    %86 = vmatpush1.msra.mxu0 0.0
    %87 = vmatprep.subr.mxu0 0.0
    %88 = vmatpush1.msra.mxu0 0.0
    %89 = vmatprep.subr.mxu0 0.0
    %90 = vmatpush1.msra.mxu0 0.0
    %91 = vmatprep.subr.mxu0 0.0
    %92 = vmatpush1.msra.mxu0 0.0
    %93 = vmatprep.subr.mxu0 0.0
    %94 = vmatpush1.msra.mxu0 0.0
    %95 = vmatprep.subr.mxu0 0.0
    %96 = vmatpush1.msra.mxu0 0.0
    %97 = vmatprep.subr.mxu0 0.0
    %98 = vmatpush1.msra.mxu0 0.0
    %99 = vmatprep.subr.mxu0 0.0
    %100 = vmatpush1.msra.mxu0 0.0
    %101 = vmatprep.subr.mxu0 0.0
    %102 = vmatpush1.msra.mxu0 0.0
    %103 = vmatprep.subr.mxu0 0.0
    %104 = vmatpush1.msra.mxu0 0.0
    %105 = vmatprep.subr.mxu0 0.0
    %106 = vmatpush1.msra.mxu0 0.0
    %107 = vmatprep.subr.mxu0 0.0
    %108 = vmatpush1.msra.mxu0 0.0
    %109 = vmatprep.subr.mxu0 0.0
    %110 = vmatpush1.msra.mxu0 0.0
    %111 = vmatprep.subr.mxu0 0.0
    %112 = vmatpush1.msra.mxu0 0.0
    %113 = vmatprep.subr.mxu0 0.0
    %114 = vmatpush1.msra.mxu0 0.0
    %115 = vmatprep.subr.mxu0 0.0
    %116 = vmatpush1.msra.mxu0 0.0
    %117 = vmatprep.subr.mxu0 0.0
    %118 = vmatpush1.msra.mxu0 0.0
    %119 = vmatprep.subr.mxu0 0.0
    %120 = vmatpush1.msra.mxu0 0.0
    %121 = vmatprep.subr.mxu0 0.0
    %122 = vmatpush1.msra.mxu0 0.0
    %123 = vmatprep.subr.mxu0 0.0
    %124 = vmatpush1.msra.mxu0 0.0
    %125 = vmatprep.subr.mxu0 0.0
    %126 = vmatpush1.msra.mxu0 0.0
    %127 = vmatprep.subr.mxu0 0.0
    %128 = vmatpush1.msra.mxu0 0.0
    %129 = vmatprep.subr.mxu0 0.0
    %130 = vmatpush1.msra.mxu0 0.0
    %131 = vmatprep.subr.mxu0 0.0
    %132 = vmatpush1.msra.mxu0 0.0
    %133 = vmatprep.subr.mxu0 0.0
    %134 = vmatpush1.msra.mxu0 0.0
    %135 = vmatprep.subr.mxu0 0.0
    %136 = vmatpush1.msra.mxu0 0.0
    %137 = vmatprep.subr.mxu0 0.0
    %138 = vmatpush1.msra.mxu0 0.0
    %139 = vmatprep.subr.mxu0 0.0
    %140 = vmatpush1.msra.mxu0 0.0
    %141 = vmatprep.subr.mxu0 0.0
    %142 = vmatpush1.msra.mxu0 0.0
    %143 = vmatprep.mubr.f32.mxu0 0.0
    %144 = vmatmul.mubr.f32.gmra.mrb[0].mxu0 %v56
    %v145 = vpop.f32.mrb[0].mxu0
    %v146 = vadd.f32 %v52, %v145
    %v147 = vpop.f32.mrb[0].mxu0
    %148 = vmatprep.mubr.f32.mxu0 0.0
    %149 = vmatmul.mubr.f32.gmra.mrb[0].mxu0 %v59
    %v150 = vpop.f32.mrb[0].mxu0
    %v151 = vadd.f32 %v52, %v150
    %v152 = vpop.f32.mrb[0].mxu0
    %153 = vmatprep.mubr.f32.mxu0 0.0
    %154 = vmatmul.mubr.f32.gmra.mrb[0].mxu0 %v62
    %v155 = vpop.f32.mrb[0].mxu0
    %v156 = vadd.f32 %v52, %v155
    %v157 = vpop.f32.mrb[0].mxu0
    %158 = vmatprep.mubr.f32.mxu0 0.0
    %159 = vmatmul.mubr.f32.gmra.mrb[0].mxu0 %v65
    %v160 = vpop.f32.mrb[0].mxu0
    %v161 = vadd.f32 %v52, %v160
    %v162 = vpop.f32.mrb[0].mxu0
    %163 = vmatprep.mubr.f32.mxu0 0.0
    %164 = vmatmul.mubr.f32.gmra.mrb[0].mxu0 %v68
    %v165 = vpop.f32.mrb[0].mxu0
    %v166 = vadd.f32 %v52, %v165
    %v167 = vpop.f32.mrb[0].mxu0
    %168 = vmatprep.mubr.f32.mxu0 0.0
    %169 = vmatmul.mubr.f32.gmra.mrb[0].mxu0 %v71
    %v170 = vpop.f32.mrb[0].mxu0
    %v171 = vadd.f32 %v52, %v170
    %v172 = vpop.f32.mrb[0].mxu0
    %173 = vmatprep.mubr.f32.mxu0 0.0
    %174 = vmatmul.mubr.f32.gmra.mrb[0].mxu0 %v74
    %v175 = vpop.f32.mrb[0].mxu0
    %v176 = vadd.f32 %v52, %v175
    %v177 = vpop.f32.mrb[0].mxu0
    %178 = vmatprep.mubr.f32.mxu0 0.0
    %179 = vmatmul.mubr.f32.gmra.mrb[0].mxu0 %v77
    %v180 = vpop.f32.mrb[0].mxu0
    %v181 = vadd.f32 %v52, %v180
    %v182 = vpop.f32.mrb[0].mxu0
    %183 = vdwg.mxu0
    %184 = vst [vmem:[#allocation2] sm:$0xff] %v146
    %185 = vst [vmem:[#allocation2 + $0x8] sm:$0xff] %v151
    %186 = vst [vmem:[#allocation2 + $0x10] sm:$0xff] %v156
    %187 = vst [vmem:[#allocation2 + $0x18] sm:$0xff] %v161
    %188 = vst [vmem:[#allocation2 + $0x20] sm:$0xff] %v166
    %189 = vst [vmem:[#allocation2 + $0x28] sm:$0xff] %v171
    %190 = vst [vmem:[#allocation2 + $0x30] sm:$0xff] %v176
    %191 = vst [vmem:[#allocation2 + $0x38] sm:$0xff] %v181
    %v192 = vld [vmem:[%s2] sm:$0xff]
    %v193 = vld [vmem:[%s2 + $0x8] sm:$0xff]
    %v194 = vld [vmem:[%s2 + $0x10] sm:$0xff]
    %v195 = vld [vmem:[%s2 + $0x18] sm:$0xff]
    %v196 = vld [vmem:[%s2 + $0x20] sm:$0xff]
    %v197 = vld [vmem:[%s2 + $0x28] sm:$0xff]
    %v198 = vld [vmem:[%s2 + $0x30] sm:$0xff]
    %v199 = vld [vmem:[%s2 + $0x38] sm:$0xff]
    %v200 = vld [vmem:[%s2 + $0x40] sm:$0xff]
    %v201 = vld [vmem:[%s2 + $0x48] sm:$0xff]
    %v202 = vld [vmem:[%s2 + $0x50] sm:$0xff]
    %v203 = vld [vmem:[%s2 + $0x58] sm:$0xff]
    %v204 = vld [vmem:[%s2 + $0x60] sm:$0xff]
    %v205 = vld [vmem:[%s2 + $0x68] sm:$0xff]
    %v206 = vld [vmem:[%s2 + $0x70] sm:$0xff]
    %v207 = vld [vmem:[%s2 + $0x78] sm:$0xff]
    %v208 = vlaneseq
    %v209 = vand.u32 %v208, 127
    %vm210 = vcmp.ge.s32.totalorder %v209, 64
    %vm211 = vcmp.lt.s32.totalorder %v209, 96
    %vm212 = vmand %vm210, %vm211
    %v213 = vld [vmem:[#allocation2] sm:$0xff]
    %214 = vmatprep.subr.mxu0 0.0
    %215 = vmatpush1.msra.mxu0 %v192
    %216 = vmatprep.subr.mxu0 0.0
    %217 = vmatpush1.msra.mxu0 %v193
    %218 = vmatprep.subr.mxu0 0.0
    %219 = vmatpush1.msra.mxu0 %v194
    %220 = vmatprep.subr.mxu0 0.0
    %221 = vmatpush1.msra.mxu0 %v195
    %222 = vmatprep.subr.mxu0 0.0
    %223 = vmatpush1.msra.mxu0 %v196
    %224 = vmatprep.subr.mxu0 0.0
    %225 = vmatpush1.msra.mxu0 %v197
    %226 = vmatprep.subr.mxu0 0.0
    %227 = vmatpush1.msra.mxu0 %v198
    %228 = vmatprep.subr.mxu0 0.0
    %229 = vmatpush1.msra.mxu0 %v199
    %230 = vmatprep.subr.mxu0 0.0
    %231 = vmatpush1.msra.mxu0 %v200
    %232 = vmatprep.subr.mxu0 0.0
    %233 = vmatpush1.msra.mxu0 %v201
    %234 = vmatprep.subr.mxu0 0.0
    %235 = vmatpush1.msra.mxu0 %v202
    %236 = vmatprep.subr.mxu0 0.0
    %237 = vmatpush1.msra.mxu0 %v203
    %238 = vmatprep.subr.mxu0 0.0
    %239 = vmatpush1.msra.mxu0 %v204
    %240 = vmatprep.subr.mxu0 0.0
    %241 = vmatpush1.msra.mxu0 %v205
    %242 = vmatprep.subr.mxu0 0.0
    %243 = vmatpush1.msra.mxu0 %v206
    %244 = vmatprep.subr.mxu0 0.0
    %245 = vmatpush1.msra.mxu0 %v207
    %246 = vmatprep.subr.mxu0 0.0
    %247 = vmatpush1.msra.mxu0 0.0
    %248 = vmatprep.subr.mxu0 0.0
    %249 = vmatpush1.msra.mxu0 0.0
    %250 = vmatprep.subr.mxu0 0.0
    %251 = vmatpush1.msra.mxu0 0.0
    %252 = vmatprep.subr.mxu0 0.0
    %253 = vmatpush1.msra.mxu0 0.0
    %254 = vmatprep.subr.mxu0 0.0
    %255 = vmatpush1.msra.mxu0 0.0
    %256 = vmatprep.subr.mxu0 0.0
    %257 = vmatpush1.msra.mxu0 0.0
    %258 = vmatprep.subr.mxu0 0.0
    %259 = vmatpush1.msra.mxu0 0.0
    %260 = vmatprep.subr.mxu0 0.0
    %261 = vmatpush1.msra.mxu0 0.0
    %262 = vmatprep.subr.mxu0 0.0
    %263 = vmatpush1.msra.mxu0 0.0
    %264 = vmatprep.subr.mxu0 0.0
    %265 = vmatpush1.msra.mxu0 0.0
    %266 = vmatprep.subr.mxu0 0.0
    %267 = vmatpush1.msra.mxu0 0.0
    %268 = vmatprep.subr.mxu0 0.0
    %269 = vmatpush1.msra.mxu0 0.0
    %270 = vmatprep.subr.mxu0 0.0
    %271 = vmatpush1.msra.mxu0 0.0
    %272 = vmatprep.subr.mxu0 0.0
    %273 = vmatpush1.msra.mxu0 0.0
    %274 = vmatprep.subr.mxu0 0.0
    %275 = vmatpush1.msra.mxu0 0.0
    %276 = vmatprep.subr.mxu0 0.0
    %277 = vmatpush1.msra.mxu0 0.0
    %278 = vmatprep.mubr.f32.mxu0 0.0
    %279 = vmatmul.mubr.f32.gmra.mrb[0].mxu0 0.0
    %v280 = vpop.f32.mrb[0].mxu0
    %v281 = vadd.f32 0.0, %v280
    %v282 = vpop.f32.mrb[0].mxu0
    %283 = vdwg.mxu0
    %v284 = vadd.f32 %v213, %v281
    %v285 = vtanh.pop %v284
    %v286 = vxor.u32 %v284, 2147483648
    %v287 = vmul.f32 %v286, 1.442695
    %v288 = vpow.pop %v287
    %v289 = vadd.f32 %v288, 1.0
    %v290 = vrcp.pop %v289
    %v291 = vmul.f32 1.0, %v290
    %v292 = vsel %vm212, %v285, %v291
    %v293 = vmul.f32 %v292, 0.0
    %294 = vrot.lane.b32.xlu0 %v292, 32
    %v295 = vpop.permute.xlu0 %294
    %296 = vrot.lane.b32.xlu0 %v292, 96
    %v297 = vpop.permute.xlu0 %296
    %v298 = vmul.f32 %v295, %v297
    %v299 = vadd.f32 %v293, %v298
    %300 = vrot.lane.b32.xlu0 %v292, 64
    %v301 = vpop.permute.xlu0 %300
    %v302 = vtanh.pop %v299
    %v303 = vmul.f32 %v301, %v302
    %v304 = vld [vmem:[#allocation2 + $0x8] sm:$0xff]
    %305 = vmatprep.subr.mxu0 0.0
    %306 = vmatpush1.msra.mxu0 %v192
    %307 = vmatprep.subr.mxu0 0.0
    %308 = vmatpush1.msra.mxu0 %v193
    %309 = vmatprep.subr.mxu0 0.0
    %310 = vmatpush1.msra.mxu0 %v194
    %311 = vmatprep.subr.mxu0 0.0
    %312 = vmatpush1.msra.mxu0 %v195
    %313 = vmatprep.subr.mxu0 0.0
    %314 = vmatpush1.msra.mxu0 %v196
    %315 = vmatprep.subr.mxu0 0.0
    %316 = vmatpush1.msra.mxu0 %v197
    %317 = vmatprep.subr.mxu0 0.0
    %318 = vmatpush1.msra.mxu0 %v198
    %319 = vmatprep.subr.mxu0 0.0
    %320 = vmatpush1.msra.mxu0 %v199
    %321 = vmatprep.subr.mxu0 0.0
    %322 = vmatpush1.msra.mxu0 %v200
    %323 = vmatprep.subr.mxu0 0.0
    %324 = vmatpush1.msra.mxu0 %v201
    %325 = vmatprep.subr.mxu0 0.0
    %326 = vmatpush1.msra.mxu0 %v202
    %327 = vmatprep.subr.mxu0 0.0
    %328 = vmatpush1.msra.mxu0 %v203
    %329 = vmatprep.subr.mxu0 0.0
    %330 = vmatpush1.msra.mxu0 %v204
    %331 = vmatprep.subr.mxu0 0.0
    %332 = vmatpush1.msra.mxu0 %v205
    %333 = vmatprep.subr.mxu0 0.0
    %334 = vmatpush1.msra.mxu0 %v206
    %335 = vmatprep.subr.mxu0 0.0
    %336 = vmatpush1.msra.mxu0 %v207
    %337 = vmatprep.subr.mxu0 0.0
    %338 = vmatpush1.msra.mxu0 0.0
    %339 = vmatprep.subr.mxu0 0.0
    %340 = vmatpush1.msra.mxu0 0.0
    %341 = vmatprep.subr.mxu0 0.0
    %342 = vmatpush1.msra.mxu0 0.0
    %343 = vmatprep.subr.mxu0 0.0
    %344 = vmatpush1.msra.mxu0 0.0
    %345 = vmatprep.subr.mxu0 0.0
    %346 = vmatpush1.msra.mxu0 0.0
    %347 = vmatprep.subr.mxu0 0.0
    %348 = vmatpush1.msra.mxu0 0.0
    %349 = vmatprep.subr.mxu0 0.0
    %350 = vmatpush1.msra.mxu0 0.0
    %351 = vmatprep.subr.mxu0 0.0
    %352 = vmatpush1.msra.mxu0 0.0
    %353 = vmatprep.subr.mxu0 0.0
    %354 = vmatpush1.msra.mxu0 0.0
    %355 = vmatprep.subr.mxu0 0.0
    %356 = vmatpush1.msra.mxu0 0.0
    %357 = vmatprep.subr.mxu0 0.0
    %358 = vmatpush1.msra.mxu0 0.0
    %359 = vmatprep.subr.mxu0 0.0
    %360 = vmatpush1.msra.mxu0 0.0
    %361 = vmatprep.subr.mxu0 0.0
    %362 = vmatpush1.msra.mxu0 0.0
    %363 = vmatprep.subr.mxu0 0.0
    %364 = vmatpush1.msra.mxu0 0.0
    %365 = vmatprep.subr.mxu0 0.0
    %366 = vmatpush1.msra.mxu0 0.0
    %367 = vmatprep.subr.mxu0 0.0
    %368 = vmatpush1.msra.mxu0 0.0
    %369 = vmatprep.mubr.f32.mxu0 0.0
    %370 = vmatmul.mubr.f32.gmra.mrb[0].mxu0 %v303
    %v371 = vpop.f32.mrb[0].mxu0
    %v372 = vadd.f32 0.0, %v371
    %v373 = vpop.f32.mrb[0].mxu0
    %374 = vdwg.mxu0
    %v375 = vadd.f32 %v304, %v372
    %v376 = vtanh.pop %v375
    %v377 = vxor.u32 %v375, 2147483648
    %v378 = vmul.f32 %v377, 1.442695
    %v379 = vpow.pop %v378
    %v380 = vadd.f32 %v379, 1.0
    %v381 = vrcp.pop %v380
    %v382 = vmul.f32 1.0, %v381
    %v383 = vsel %vm212, %v376, %v382
    %v384 = vmul.f32 %v383, %v299
    %385 = vrot.lane.b32.xlu0 %v383, 32
    %v386 = vpop.permute.xlu0 %385
    %387 = vrot.lane.b32.xlu0 %v383, 96
    %v388 = vpop.permute.xlu0 %387
    %v389 = vmul.f32 %v386, %v388
    %v390 = vadd.f32 %v384, %v389
    %391 = vrot.lane.b32.xlu0 %v383, 64
    %v392 = vpop.permute.xlu0 %391
    %v393 = vtanh.pop %v390
    %v394 = vmul.f32 %v392, %v393
    %v395 = vld [vmem:[#allocation2 + $0x10] sm:$0xff]
    %396 = vmatprep.subr.mxu0 0.0
    %397 = vmatpush1.msra.mxu0 %v192
    %398 = vmatprep.subr.mxu0 0.0
    %399 = vmatpush1.msra.mxu0 %v193
    %400 = vmatprep.subr.mxu0 0.0
    %401 = vmatpush1.msra.mxu0 %v194
    %402 = vmatprep.subr.mxu0 0.0
    %403 = vmatpush1.msra.mxu0 %v195
    %404 = vmatprep.subr.mxu0 0.0
    %405 = vmatpush1.msra.mxu0 %v196
    %406 = vmatprep.subr.mxu0 0.0
    %407 = vmatpush1.msra.mxu0 %v197
    %408 = vmatprep.subr.mxu0 0.0
    %409 = vmatpush1.msra.mxu0 %v198
    %410 = vmatprep.subr.mxu0 0.0
    %411 = vmatpush1.msra.mxu0 %v199
    %412 = vmatprep.subr.mxu0 0.0
    %413 = vmatpush1.msra.mxu0 %v200
    %414 = vmatprep.subr.mxu0 0.0
    %415 = vmatpush1.msra.mxu0 %v201
    %416 = vmatprep.subr.mxu0 0.0
    %417 = vmatpush1.msra.mxu0 %v202
    %418 = vmatprep.subr.mxu0 0.0
    %419 = vmatpush1.msra.mxu0 %v203
    %420 = vmatprep.subr.mxu0 0.0
    %421 = vmatpush1.msra.mxu0 %v204
    %422 = vmatprep.subr.mxu0 0.0
    %423 = vmatpush1.msra.mxu0 %v205
    %424 = vmatprep.subr.mxu0 0.0
    %425 = vmatpush1.msra.mxu0 %v206
    %426 = vmatprep.subr.mxu0 0.0
    %427 = vmatpush1.msra.mxu0 %v207
    %428 = vmatprep.subr.mxu0 0.0
    %429 = vmatpush1.msra.mxu0 0.0
    %430 = vmatprep.subr.mxu0 0.0
    %431 = vmatpush1.msra.mxu0 0.0
    %432 = vmatprep.subr.mxu0 0.0
    %433 = vmatpush1.msra.mxu0 0.0
    %434 = vmatprep.subr.mxu0 0.0
    %435 = vmatpush1.msra.mxu0 0.0
    %436 = vmatprep.subr.mxu0 0.0
    %437 = vmatpush1.msra.mxu0 0.0
    %438 = vmatprep.subr.mxu0 0.0
    %439 = vmatpush1.msra.mxu0 0.0
    %440 = vmatprep.subr.mxu0 0.0
    %441 = vmatpush1.msra.mxu0 0.0
    %442 = vmatprep.subr.mxu0 0.0
    %443 = vmatpush1.msra.mxu0 0.0
    %444 = vmatprep.subr.mxu0 0.0
    %445 = vmatpush1.msra.mxu0 0.0
    %446 = vmatprep.subr.mxu0 0.0
    %447 = vmatpush1.msra.mxu0 0.0
    %448 = vmatprep.subr.mxu0 0.0
    %449 = vmatpush1.msra.mxu0 0.0
    %450 = vmatprep.subr.mxu0 0.0
    %451 = vmatpush1.msra.mxu0 0.0
    %452 = vmatprep.subr.mxu0 0.0
    %453 = vmatpush1.msra.mxu0 0.0
    %454 = vmatprep.subr.mxu0 0.0
    %455 = vmatpush1.msra.mxu0 0.0
    %456 = vmatprep.subr.mxu0 0.0
    %457 = vmatpush1.msra.mxu0 0.0
    %458 = vmatprep.subr.mxu0 0.0
    %459 = vmatpush1.msra.mxu0 0.0
    %460 = vmatprep.mubr.f32.mxu0 0.0
    %461 = vmatmul.mubr.f32.gmra.mrb[0].mxu0 %v394
    %v462 = vpop.f32.mrb[0].mxu0
    %v463 = vadd.f32 0.0, %v462
    %v464 = vpop.f32.mrb[0].mxu0
    %465 = vdwg.mxu0
    %v466 = vadd.f32 %v395, %v463
    %v467 = vtanh.pop %v466
    %v468 = vxor.u32 %v466, 2147483648
    %v469 = vmul.f32 %v468, 1.442695
    %v470 = vpow.pop %v469
    %v471 = vadd.f32 %v470, 1.0
    %v472 = vrcp.pop %v471
    %v473 = vmul.f32 1.0, %v472
    %v474 = vsel %vm212, %v467, %v473
    %v475 = vmul.f32 %v474, %v390
    %476 = vrot.lane.b32.xlu0 %v474, 32
    %v477 = vpop.permute.xlu0 %476
    %478 = vrot.lane.b32.xlu0 %v474, 96
    %v479 = vpop.permute.xlu0 %478
    %v480 = vmul.f32 %v477, %v479
    %v481 = vadd.f32 %v475, %v480
    %482 = vrot.lane.b32.xlu0 %v474, 64
    %v483 = vpop.permute.xlu0 %482
    %v484 = vtanh.pop %v481
    %v485 = vmul.f32 %v483, %v484
    %v486 = vld [vmem:[#allocation2 + $0x18] sm:$0xff]
    %487 = vmatprep.subr.mxu0 0.0
    %488 = vmatpush1.msra.mxu0 %v192
    %489 = vmatprep.subr.mxu0 0.0
    %490 = vmatpush1.msra.mxu0 %v193
    %491 = vmatprep.subr.mxu0 0.0
    %492 = vmatpush1.msra.mxu0 %v194
    %493 = vmatprep.subr.mxu0 0.0
    %494 = vmatpush1.msra.mxu0 %v195
    %495 = vmatprep.subr.mxu0 0.0
    %496 = vmatpush1.msra.mxu0 %v196
    %497 = vmatprep.subr.mxu0 0.0
    %498 = vmatpush1.msra.mxu0 %v197
    %499 = vmatprep.subr.mxu0 0.0
    %500 = vmatpush1.msra.mxu0 %v198
    %501 = vmatprep.subr.mxu0 0.0
    %502 = vmatpush1.msra.mxu0 %v199
    %503 = vmatprep.subr.mxu0 0.0
    %504 = vmatpush1.msra.mxu0 %v200
    %505 = vmatprep.subr.mxu0 0.0
    %506 = vmatpush1.msra.mxu0 %v201
    %507 = vmatprep.subr.mxu0 0.0
    %508 = vmatpush1.msra.mxu0 %v202
    %509 = vmatprep.subr.mxu0 0.0
    %510 = vmatpush1.msra.mxu0 %v203
    %511 = vmatprep.subr.mxu0 0.0
    %512 = vmatpush1.msra.mxu0 %v204
    %513 = vmatprep.subr.mxu0 0.0
    %514 = vmatpush1.msra.mxu0 %v205
    %515 = vmatprep.subr.mxu0 0.0
    %516 = vmatpush1.msra.mxu0 %v206
    %517 = vmatprep.subr.mxu0 0.0
    %518 = vmatpush1.msra.mxu0 %v207
    %519 = vmatprep.subr.mxu0 0.0
    %520 = vmatpush1.msra.mxu0 0.0
    %521 = vmatprep.subr.mxu0 0.0
    %522 = vmatpush1.msra.mxu0 0.0
    %523 = vmatprep.subr.mxu0 0.0
    %524 = vmatpush1.msra.mxu0 0.0
    %525 = vmatprep.subr.mxu0 0.0
    %526 = vmatpush1.msra.mxu0 0.0
    %527 = vmatprep.subr.mxu0 0.0
    %528 = vmatpush1.msra.mxu0 0.0
    %529 = vmatprep.subr.mxu0 0.0
    %530 = vmatpush1.msra.mxu0 0.0
    %531 = vmatprep.subr.mxu0 0.0
    %532 = vmatpush1.msra.mxu0 0.0
    %533 = vmatprep.subr.mxu0 0.0
    %534 = vmatpush1.msra.mxu0 0.0
    %535 = vmatprep.subr.mxu0 0.0
    %536 = vmatpush1.msra.mxu0 0.0
    %537 = vmatprep.subr.mxu0 0.0
    %538 = vmatpush1.msra.mxu0 0.0
    %539 = vmatprep.subr.mxu0 0.0
    %540 = vmatpush1.msra.mxu0 0.0
    %541 = vmatprep.subr.mxu0 0.0
    %542 = vmatpush1.msra.mxu0 0.0
    %543 = vmatprep.subr.mxu0 0.0
    %544 = vmatpush1.msra.mxu0 0.0
    %545 = vmatprep.subr.mxu0 0.0
    %546 = vmatpush1.msra.mxu0 0.0
    %547 = vmatprep.subr.mxu0 0.0
    %548 = vmatpush1.msra.mxu0 0.0
    %549 = vmatprep.subr.mxu0 0.0
    %550 = vmatpush1.msra.mxu0 0.0
    %551 = vmatprep.mubr.f32.mxu0 0.0
    %552 = vmatmul.mubr.f32.gmra.mrb[0].mxu0 %v485
    %v553 = vpop.f32.mrb[0].mxu0
    %v554 = vadd.f32 0.0, %v553
    %v555 = vpop.f32.mrb[0].mxu0
    %556 = vdwg.mxu0
    %v557 = vadd.f32 %v486, %v554
    %v558 = vtanh.pop %v557
    %v559 = vxor.u32 %v557, 2147483648
    %v560 = vmul.f32 %v559, 1.442695
    %v561 = vpow.pop %v560
    %v562 = vadd.f32 %v561, 1.0
    %v563 = vrcp.pop %v562
    %v564 = vmul.f32 1.0, %v563
    %v565 = vsel %vm212, %v558, %v564
    %v566 = vmul.f32 %v565, %v481
    %567 = vrot.lane.b32.xlu0 %v565, 32
    %v568 = vpop.permute.xlu0 %567
    %569 = vrot.lane.b32.xlu0 %v565, 96
    %v570 = vpop.permute.xlu0 %569
    %v571 = vmul.f32 %v568, %v570
    %v572 = vadd.f32 %v566, %v571
    %573 = vrot.lane.b32.xlu0 %v565, 64
    %v574 = vpop.permute.xlu0 %573
    %v575 = vtanh.pop %v572
    %v576 = vmul.f32 %v574, %v575
    %v577 = vld [vmem:[#allocation2 + $0x20] sm:$0xff]
    %578 = vmatprep.subr.mxu0 0.0
    %579 = vmatpush1.msra.mxu0 %v192
    %580 = vmatprep.subr.mxu0 0.0
    %581 = vmatpush1.msra.mxu0 %v193
    %582 = vmatprep.subr.mxu0 0.0
    %583 = vmatpush1.msra.mxu0 %v194
    %584 = vmatprep.subr.mxu0 0.0
    %585 = vmatpush1.msra.mxu0 %v195
    %586 = vmatprep.subr.mxu0 0.0
    %587 = vmatpush1.msra.mxu0 %v196
    %588 = vmatprep.subr.mxu0 0.0
    %589 = vmatpush1.msra.mxu0 %v197
    %590 = vmatprep.subr.mxu0 0.0
    %591 = vmatpush1.msra.mxu0 %v198
    %592 = vmatprep.subr.mxu0 0.0
    %593 = vmatpush1.msra.mxu0 %v199
    %594 = vmatprep.subr.mxu0 0.0
    %595 = vmatpush1.msra.mxu0 %v200
    %596 = vmatprep.subr.mxu0 0.0
    %597 = vmatpush1.msra.mxu0 %v201
    %598 = vmatprep.subr.mxu0 0.0
    %599 = vmatpush1.msra.mxu0 %v202
    %600 = vmatprep.subr.mxu0 0.0
    %601 = vmatpush1.msra.mxu0 %v203
    %602 = vmatprep.subr.mxu0 0.0
    %603 = vmatpush1.msra.mxu0 %v204
    %604 = vmatprep.subr.mxu0 0.0
    %605 = vmatpush1.msra.mxu0 %v205
    %606 = vmatprep.subr.mxu0 0.0
    %607 = vmatpush1.msra.mxu0 %v206
    %608 = vmatprep.subr.mxu0 0.0
    %609 = vmatpush1.msra.mxu0 %v207
    %610 = vmatprep.subr.mxu0 0.0
    %611 = vmatpush1.msra.mxu0 0.0
    %612 = vmatprep.subr.mxu0 0.0
    %613 = vmatpush1.msra.mxu0 0.0
    %614 = vmatprep.subr.mxu0 0.0
    %615 = vmatpush1.msra.mxu0 0.0
    %616 = vmatprep.subr.mxu0 0.0
    %617 = vmatpush1.msra.mxu0 0.0
    %618 = vmatprep.subr.mxu0 0.0
    %619 = vmatpush1.msra.mxu0 0.0
    %620 = vmatprep.subr.mxu0 0.0
    %621 = vmatpush1.msra.mxu0 0.0
    %622 = vmatprep.subr.mxu0 0.0
    %623 = vmatpush1.msra.mxu0 0.0
    %624 = vmatprep.subr.mxu0 0.0
    %625 = vmatpush1.msra.mxu0 0.0
    %626 = vmatprep.subr.mxu0 0.0
    %627 = vmatpush1.msra.mxu0 0.0
    %628 = vmatprep.subr.mxu0 0.0
    %629 = vmatpush1.msra.mxu0 0.0
    %630 = vmatprep.subr.mxu0 0.0
    %631 = vmatpush1.msra.mxu0 0.0
    %632 = vmatprep.subr.mxu0 0.0
    %633 = vmatpush1.msra.mxu0 0.0
    %634 = vmatprep.subr.mxu0 0.0
    %635 = vmatpush1.msra.mxu0 0.0
    %636 = vmatprep.subr.mxu0 0.0
    %637 = vmatpush1.msra.mxu0 0.0
    %638 = vmatprep.subr.mxu0 0.0
    %639 = vmatpush1.msra.mxu0 0.0
    %640 = vmatprep.subr.mxu0 0.0
    %641 = vmatpush1.msra.mxu0 0.0
    %642 = vmatprep.mubr.f32.mxu0 0.0
    %643 = vmatmul.mubr.f32.gmra.mrb[0].mxu0 %v576
    %v644 = vpop.f32.mrb[0].mxu0
    %v645 = vadd.f32 0.0, %v644
    %v646 = vpop.f32.mrb[0].mxu0
    %647 = vdwg.mxu0
    %v648 = vadd.f32 %v577, %v645
    %v649 = vtanh.pop %v648
    %v650 = vxor.u32 %v648, 2147483648
    %v651 = vmul.f32 %v650, 1.442695
    %v652 = vpow.pop %v651
    %v653 = vadd.f32 %v652, 1.0
    %v654 = vrcp.pop %v653
    %v655 = vmul.f32 1.0, %v654
    %v656 = vsel %vm212, %v649, %v655
    %v657 = vmul.f32 %v656, %v572
    %658 = vrot.lane.b32.xlu0 %v656, 32
    %v659 = vpop.permute.xlu0 %658
    %660 = vrot.lane.b32.xlu0 %v656, 96
    %v661 = vpop.permute.xlu0 %660
    %v662 = vmul.f32 %v659, %v661
    %v663 = vadd.f32 %v657, %v662
    %664 = vrot.lane.b32.xlu0 %v656, 64
    %v665 = vpop.permute.xlu0 %664
    %v666 = vtanh.pop %v663
    %v667 = vmul.f32 %v665, %v666
    %v668 = vld [vmem:[#allocation2 + $0x28] sm:$0xff]
    %669 = vmatprep.subr.mxu0 0.0
    %670 = vmatpush1.msra.mxu0 %v192
    %671 = vmatprep.subr.mxu0 0.0
    %672 = vmatpush1.msra.mxu0 %v193
    %673 = vmatprep.subr.mxu0 0.0
    %674 = vmatpush1.msra.mxu0 %v194
    %675 = vmatprep.subr.mxu0 0.0
    %676 = vmatpush1.msra.mxu0 %v195
    %677 = vmatprep.subr.mxu0 0.0
    %678 = vmatpush1.msra.mxu0 %v196
    %679 = vmatprep.subr.mxu0 0.0
    %680 = vmatpush1.msra.mxu0 %v197
    %681 = vmatprep.subr.mxu0 0.0
    %682 = vmatpush1.msra.mxu0 %v198
    %683 = vmatprep.subr.mxu0 0.0
    %684 = vmatpush1.msra.mxu0 %v199
    %685 = vmatprep.subr.mxu0 0.0
    %686 = vmatpush1.msra.mxu0 %v200
    %687 = vmatprep.subr.mxu0 0.0
    %688 = vmatpush1.msra.mxu0 %v201
    %689 = vmatprep.subr.mxu0 0.0
    %690 = vmatpush1.msra.mxu0 %v202
    %691 = vmatprep.subr.mxu0 0.0
    %692 = vmatpush1.msra.mxu0 %v203
    %693 = vmatprep.subr.mxu0 0.0
    %694 = vmatpush1.msra.mxu0 %v204
    %695 = vmatprep.subr.mxu0 0.0
    %696 = vmatpush1.msra.mxu0 %v205
    %697 = vmatprep.subr.mxu0 0.0
    %698 = vmatpush1.msra.mxu0 %v206
    %699 = vmatprep.subr.mxu0 0.0
    %700 = vmatpush1.msra.mxu0 %v207
    %701 = vmatprep.subr.mxu0 0.0
    %702 = vmatpush1.msra.mxu0 0.0
    %703 = vmatprep.subr.mxu0 0.0
    %704 = vmatpush1.msra.mxu0 0.0
    %705 = vmatprep.subr.mxu0 0.0
    %706 = vmatpush1.msra.mxu0 0.0
    %707 = vmatprep.subr.mxu0 0.0
    %708 = vmatpush1.msra.mxu0 0.0
    %709 = vmatprep.subr.mxu0 0.0
    %710 = vmatpush1.msra.mxu0 0.0
    %711 = vmatprep.subr.mxu0 0.0
    %712 = vmatpush1.msra.mxu0 0.0
    %713 = vmatprep.subr.mxu0 0.0
    %714 = vmatpush1.msra.mxu0 0.0
    %715 = vmatprep.subr.mxu0 0.0
    %716 = vmatpush1.msra.mxu0 0.0
    %717 = vmatprep.subr.mxu0 0.0
    %718 = vmatpush1.msra.mxu0 0.0
    %719 = vmatprep.subr.mxu0 0.0
    %720 = vmatpush1.msra.mxu0 0.0
    %721 = vmatprep.subr.mxu0 0.0
    %722 = vmatpush1.msra.mxu0 0.0
    %723 = vmatprep.subr.mxu0 0.0
    %724 = vmatpush1.msra.mxu0 0.0
    %725 = vmatprep.subr.mxu0 0.0
    %726 = vmatpush1.msra.mxu0 0.0
    %727 = vmatprep.subr.mxu0 0.0
    %728 = vmatpush1.msra.mxu0 0.0
    %729 = vmatprep.subr.mxu0 0.0
    %730 = vmatpush1.msra.mxu0 0.0
    %731 = vmatprep.subr.mxu0 0.0
    %732 = vmatpush1.msra.mxu0 0.0
    %733 = vmatprep.mubr.f32.mxu0 0.0
    %734 = vmatmul.mubr.f32.gmra.mrb[0].mxu0 %v667
    %v735 = vpop.f32.mrb[0].mxu0
    %v736 = vadd.f32 0.0, %v735
    %v737 = vpop.f32.mrb[0].mxu0
    %738 = vdwg.mxu0
    %v739 = vadd.f32 %v668, %v736
    %v740 = vtanh.pop %v739
    %v741 = vxor.u32 %v739, 2147483648
    %v742 = vmul.f32 %v741, 1.442695
    %v743 = vpow.pop %v742
    %v744 = vadd.f32 %v743, 1.0
    %v745 = vrcp.pop %v744
    %v746 = vmul.f32 1.0, %v745
    %v747 = vsel %vm212, %v740, %v746
    %v748 = vmul.f32 %v747, %v663
    %749 = vrot.lane.b32.xlu0 %v747, 32
    %v750 = vpop.permute.xlu0 %749
    %751 = vrot.lane.b32.xlu0 %v747, 96
    %v752 = vpop.permute.xlu0 %751
    %v753 = vmul.f32 %v750, %v752
    %v754 = vadd.f32 %v748, %v753
    %755 = vrot.lane.b32.xlu0 %v747, 64
    %v756 = vpop.permute.xlu0 %755
    %v757 = vtanh.pop %v754
    %v758 = vmul.f32 %v756, %v757
    %v759 = vld [vmem:[#allocation2 + $0x30] sm:$0xff]
    %760 = vmatprep.subr.mxu0 0.0
    %761 = vmatpush1.msra.mxu0 %v192
    %762 = vmatprep.subr.mxu0 0.0
    %763 = vmatpush1.msra.mxu0 %v193
    %764 = vmatprep.subr.mxu0 0.0
    %765 = vmatpush1.msra.mxu0 %v194
    %766 = vmatprep.subr.mxu0 0.0
    %767 = vmatpush1.msra.mxu0 %v195
    %768 = vmatprep.subr.mxu0 0.0
    %769 = vmatpush1.msra.mxu0 %v196
    %770 = vmatprep.subr.mxu0 0.0
    %771 = vmatpush1.msra.mxu0 %v197
    %772 = vmatprep.subr.mxu0 0.0
    %773 = vmatpush1.msra.mxu0 %v198
    %774 = vmatprep.subr.mxu0 0.0
    %775 = vmatpush1.msra.mxu0 %v199
    %776 = vmatprep.subr.mxu0 0.0
    %777 = vmatpush1.msra.mxu0 %v200
    %778 = vmatprep.subr.mxu0 0.0
    %779 = vmatpush1.msra.mxu0 %v201
    %780 = vmatprep.subr.mxu0 0.0
    %781 = vmatpush1.msra.mxu0 %v202
    %782 = vmatprep.subr.mxu0 0.0
    %783 = vmatpush1.msra.mxu0 %v203
    %784 = vmatprep.subr.mxu0 0.0
    %785 = vmatpush1.msra.mxu0 %v204
    %786 = vmatprep.subr.mxu0 0.0
    %787 = vmatpush1.msra.mxu0 %v205
    %788 = vmatprep.subr.mxu0 0.0
    %789 = vmatpush1.msra.mxu0 %v206
    %790 = vmatprep.subr.mxu0 0.0
    %791 = vmatpush1.msra.mxu0 %v207
    %792 = vmatprep.subr.mxu0 0.0
    %793 = vmatpush1.msra.mxu0 0.0
    %794 = vmatprep.subr.mxu0 0.0
    %795 = vmatpush1.msra.mxu0 0.0
    %796 = vmatprep.subr.mxu0 0.0
    %797 = vmatpush1.msra.mxu0 0.0
    %798 = vmatprep.subr.mxu0 0.0
    %799 = vmatpush1.msra.mxu0 0.0
    %800 = vmatprep.subr.mxu0 0.0
    %801 = vmatpush1.msra.mxu0 0.0
    %802 = vmatprep.subr.mxu0 0.0
    %803 = vmatpush1.msra.mxu0 0.0
    %804 = vmatprep.subr.mxu0 0.0
    %805 = vmatpush1.msra.mxu0 0.0
    %806 = vmatprep.subr.mxu0 0.0
    %807 = vmatpush1.msra.mxu0 0.0
    %808 = vmatprep.subr.mxu0 0.0
    %809 = vmatpush1.msra.mxu0 0.0
    %810 = vmatprep.subr.mxu0 0.0
    %811 = vmatpush1.msra.mxu0 0.0
    %812 = vmatprep.subr.mxu0 0.0
    %813 = vmatpush1.msra.mxu0 0.0
    %814 = vmatprep.subr.mxu0 0.0
    %815 = vmatpush1.msra.mxu0 0.0
    %816 = vmatprep.subr.mxu0 0.0
    %817 = vmatpush1.msra.mxu0 0.0
    %818 = vmatprep.subr.mxu0 0.0
    %819 = vmatpush1.msra.mxu0 0.0
    %820 = vmatprep.subr.mxu0 0.0
    %821 = vmatpush1.msra.mxu0 0.0
    %822 = vmatprep.subr.mxu0 0.0
    %823 = vmatpush1.msra.mxu0 0.0
    %824 = vmatprep.mubr.f32.mxu0 0.0
    %825 = vmatmul.mubr.f32.gmra.mrb[0].mxu0 %v758
    %v826 = vpop.f32.mrb[0].mxu0
    %v827 = vadd.f32 0.0, %v826
    %v828 = vpop.f32.mrb[0].mxu0
    %829 = vdwg.mxu0
    %v830 = vadd.f32 %v759, %v827
    %v831 = vtanh.pop %v830
    %v832 = vxor.u32 %v830, 2147483648
    %v833 = vmul.f32 %v832, 1.442695
    %v834 = vpow.pop %v833
    %v835 = vadd.f32 %v834, 1.0
    %v836 = vrcp.pop %v835
    %v837 = vmul.f32 1.0, %v836
    %v838 = vsel %vm212, %v831, %v837
    %v839 = vmul.f32 %v838, %v754
    %840 = vrot.lane.b32.xlu0 %v838, 32
    %v841 = vpop.permute.xlu0 %840
    %842 = vrot.lane.b32.xlu0 %v838, 96
    %v843 = vpop.permute.xlu0 %842
    %v844 = vmul.f32 %v841, %v843
    %v845 = vadd.f32 %v839, %v844
    %846 = vrot.lane.b32.xlu0 %v838, 64
    %v847 = vpop.permute.xlu0 %846
    %v848 = vtanh.pop %v845
    %v849 = vmul.f32 %v847, %v848
    %v850 = vld [vmem:[#allocation2 + $0x38] sm:$0xff]
    %851 = vmatprep.subr.mxu0 0.0
    %852 = vmatpush1.msra.mxu0 %v192
    %853 = vmatprep.subr.mxu0 0.0
    %854 = vmatpush1.msra.mxu0 %v193
    %855 = vmatprep.subr.mxu0 0.0
    %856 = vmatpush1.msra.mxu0 %v194
    %857 = vmatprep.subr.mxu0 0.0
    %858 = vmatpush1.msra.mxu0 %v195
    %859 = vmatprep.subr.mxu0 0.0
    %860 = vmatpush1.msra.mxu0 %v196
    %861 = vmatprep.subr.mxu0 0.0
    %862 = vmatpush1.msra.mxu0 %v197
    %863 = vmatprep.subr.mxu0 0.0
    %864 = vmatpush1.msra.mxu0 %v198
    %865 = vmatprep.subr.mxu0 0.0
    %866 = vmatpush1.msra.mxu0 %v199
    %867 = vmatprep.subr.mxu0 0.0
    %868 = vmatpush1.msra.mxu0 %v200
    %869 = vmatprep.subr.mxu0 0.0
    %870 = vmatpush1.msra.mxu0 %v201
    %871 = vmatprep.subr.mxu0 0.0
    %872 = vmatpush1.msra.mxu0 %v202
    %873 = vmatprep.subr.mxu0 0.0
    %874 = vmatpush1.msra.mxu0 %v203
    %875 = vmatprep.subr.mxu0 0.0
    %876 = vmatpush1.msra.mxu0 %v204
    %877 = vmatprep.subr.mxu0 0.0
    %878 = vmatpush1.msra.mxu0 %v205
    %879 = vmatprep.subr.mxu0 0.0
    %880 = vmatpush1.msra.mxu0 %v206
    %881 = vmatprep.subr.mxu0 0.0
    %882 = vmatpush1.msra.mxu0 %v207
    %883 = vmatprep.subr.mxu0 0.0
    %884 = vmatpush1.msra.mxu0 0.0
    %885 = vmatprep.subr.mxu0 0.0
    %886 = vmatpush1.msra.mxu0 0.0
    %887 = vmatprep.subr.mxu0 0.0
    %888 = vmatpush1.msra.mxu0 0.0
    %889 = vmatprep.subr.mxu0 0.0
    %890 = vmatpush1.msra.mxu0 0.0
    %891 = vmatprep.subr.mxu0 0.0
    %892 = vmatpush1.msra.mxu0 0.0
    %893 = vmatprep.subr.mxu0 0.0
    %894 = vmatpush1.msra.mxu0 0.0
    %895 = vmatprep.subr.mxu0 0.0
    %896 = vmatpush1.msra.mxu0 0.0
    %897 = vmatprep.subr.mxu0 0.0
    %898 = vmatpush1.msra.mxu0 0.0
    %899 = vmatprep.subr.mxu0 0.0
    %900 = vmatpush1.msra.mxu0 0.0
    %901 = vmatprep.subr.mxu0 0.0
    %902 = vmatpush1.msra.mxu0 0.0
    %903 = vmatprep.subr.mxu0 0.0
    %904 = vmatpush1.msra.mxu0 0.0
    %905 = vmatprep.subr.mxu0 0.0
    %906 = vmatpush1.msra.mxu0 0.0
    %907 = vmatprep.subr.mxu0 0.0
    %908 = vmatpush1.msra.mxu0 0.0
    %909 = vmatprep.subr.mxu0 0.0
    %910 = vmatpush1.msra.mxu0 0.0
    %911 = vmatprep.subr.mxu0 0.0
    %912 = vmatpush1.msra.mxu0 0.0
    %913 = vmatprep.subr.mxu0 0.0
    %914 = vmatpush1.msra.mxu0 0.0
    %915 = vmatprep.mubr.f32.mxu0 0.0
    %916 = vmatmul.mubr.f32.gmra.mrb[0].mxu0 %v849
    %v917 = vpop.f32.mrb[0].mxu0
    %v918 = vadd.f32 0.0, %v917
    %v919 = vpop.f32.mrb[0].mxu0
    %920 = vdwg.mxu0
    %v921 = vadd.f32 %v850, %v918
    %v922 = vtanh.pop %v921
    %v923 = vxor.u32 %v921, 2147483648
    %v924 = vmul.f32 %v923, 1.442695
    %v925 = vpow.pop %v924
    %v926 = vadd.f32 %v925, 1.0
    %v927 = vrcp.pop %v926
    %v928 = vmul.f32 1.0, %v927
    %v929 = vsel %vm212, %v922, %v928
    %v930 = vmul.f32 %v929, %v845
    %931 = vrot.lane.b32.xlu0 %v929, 32
    %v932 = vpop.permute.xlu0 %931
    %933 = vrot.lane.b32.xlu0 %v929, 96
    %v934 = vpop.permute.xlu0 %933
    %v935 = vmul.f32 %v932, %v934
    %v936 = vadd.f32 %v930, %v935
    %937 = vrot.lane.b32.xlu0 %v929, 64
    %v938 = vpop.permute.xlu0 %937
    %v939 = vtanh.pop %v936
    %v940 = vmul.f32 %v938, %v939
    %v941 = vld [vmem:[#allocation3] sm:$0xff]
    %v942 = vld [vmem:[#allocation3 + $0x8] sm:$0xff]
    %v943 = vld [vmem:[#allocation3 + $0x10] sm:$0xff]
    %v944 = vld [vmem:[#allocation3 + $0x18] sm:$0xff]
    %v945 = vld [vmem:[#allocation3 + $0x20] sm:$0xff]
    %v946 = vld [vmem:[#allocation3 + $0x28] sm:$0xff]
    %v947 = vld [vmem:[#allocation3 + $0x30] sm:$0xff]
    %v948 = vld [vmem:[#allocation3 + $0x38] sm:$0xff]
    %v949 = vld [vmem:[#allocation3 + $0x40] sm:$0xff]
    %v950 = vld [vmem:[#allocation3 + $0x48] sm:$0xff]
    %v951 = vld [vmem:[#allocation3 + $0x50] sm:$0xff]
    %v952 = vld [vmem:[#allocation3 + $0x58] sm:$0xff]
    %v953 = vld [vmem:[#allocation3 + $0x60] sm:$0xff]
    %v954 = vld [vmem:[#allocation3 + $0x68] sm:$0xff]
    %v955 = vld [vmem:[#allocation3 + $0x70] sm:$0xff]
    %v956 = vld [vmem:[#allocation3 + $0x78] sm:$0xff]
    %v957 = vld [vmem:[%s5] sm:$0x1]
    %v959 = vlaneseq
    %v960 = vshrl.u32 %v959, 7
    %v961 = vsub.s32 0, %v960
    %v962 = vrot.slane %v957, %v961
    %964 = vmatprep.subr.mxu0 0.0
    %965 = vmatpush1.msra.mxu0 %v941
    %966 = vmatprep.subr.mxu0 0.0
    %967 = vmatpush1.msra.mxu0 %v942
    %968 = vmatprep.subr.mxu0 0.0
    %969 = vmatpush1.msra.mxu0 %v943
    %970 = vmatprep.subr.mxu0 0.0
    %971 = vmatpush1.msra.mxu0 %v944
    %972 = vmatprep.subr.mxu0 0.0
    %973 = vmatpush1.msra.mxu0 %v945
    %974 = vmatprep.subr.mxu0 0.0
    %975 = vmatpush1.msra.mxu0 %v946
    %976 = vmatprep.subr.mxu0 0.0
    %977 = vmatpush1.msra.mxu0 %v947
    %978 = vmatprep.subr.mxu0 0.0
    %979 = vmatpush1.msra.mxu0 %v948
    %980 = vmatprep.subr.mxu0 0.0
    %981 = vmatpush1.msra.mxu0 %v949
    %982 = vmatprep.subr.mxu0 0.0
    %983 = vmatpush1.msra.mxu0 %v950
    %984 = vmatprep.subr.mxu0 0.0
    %985 = vmatpush1.msra.mxu0 %v951
    %986 = vmatprep.subr.mxu0 0.0
    %987 = vmatpush1.msra.mxu0 %v952
    %988 = vmatprep.subr.mxu0 0.0
    %989 = vmatpush1.msra.mxu0 %v953
    %990 = vmatprep.subr.mxu0 0.0
    %991 = vmatpush1.msra.mxu0 %v954
    %992 = vmatprep.subr.mxu0 0.0
    %993 = vmatpush1.msra.mxu0 %v955
    %994 = vmatprep.subr.mxu0 0.0
    %995 = vmatpush1.msra.mxu0 %v956
    %996 = vmatprep.subr.mxu0 0.0
    %997 = vmatpush1.msra.mxu0 0.0
    %998 = vmatprep.subr.mxu0 0.0
    %999 = vmatpush1.msra.mxu0 0.0
    %1000 = vmatprep.subr.mxu0 0.0
    %1001 = vmatpush1.msra.mxu0 0.0
    %1002 = vmatprep.subr.mxu0 0.0
    %1003 = vmatpush1.msra.mxu0 0.0
    %1004 = vmatprep.subr.mxu0 0.0
    %1005 = vmatpush1.msra.mxu0 0.0
    %1006 = vmatprep.subr.mxu0 0.0
    %1007 = vmatpush1.msra.mxu0 0.0
    %1008 = vmatprep.subr.mxu0 0.0
    %1009 = vmatpush1.msra.mxu0 0.0
    %1010 = vmatprep.subr.mxu0 0.0
    %1011 = vmatpush1.msra.mxu0 0.0
    %1012 = vmatprep.subr.mxu0 0.0
    %1013 = vmatpush1.msra.mxu0 0.0
    %1014 = vmatprep.subr.mxu0 0.0
    %1015 = vmatpush1.msra.mxu0 0.0
    %1016 = vmatprep.subr.mxu0 0.0
    %1017 = vmatpush1.msra.mxu0 0.0
    %1018 = vmatprep.subr.mxu0 0.0
    %1019 = vmatpush1.msra.mxu0 0.0
    %1020 = vmatprep.subr.mxu0 0.0
    %1021 = vmatpush1.msra.mxu0 0.0
    %1022 = vmatprep.subr.mxu0 0.0
    %1023 = vmatpush1.msra.mxu0 0.0
    %1024 = vmatprep.subr.mxu0 0.0
    %1025 = vmatpush1.msra.mxu0 0.0
    %1026 = vmatprep.subr.mxu0 0.0
    %1027 = vmatpush1.msra.mxu0 0.0
    %1028 = vmatprep.mubr.f32.mxu0 0.0
    %1029 = vmatmul.mubr.f32.gmra.mrb[0].mxu0 %v940
    %v1030 = vpop.f32.mrb[0].mxu0
    %v1031 = vadd.f32 %v962, %v1030
    %v1032 = vpop.f32.mrb[0].mxu0
    %1033 = vdwg.mxu0
    %1034 = vst [vmem:[%s6] sm:$0xff] %v1031
    // Predicated region
    $region30: #{lstm_state_estimation.1} parent=1 // pred_check
      _
    $region31: #{lstm_state_estimation.1} parent=1 // pred_check_branch
      %1036 = sbr.rel (0) target = $region33
    $region32: #{lstm_state_estimation.1} parent=1 // pred_region
      _
    $region33: #{lstm_state_estimation.1} parent=1 // pred_fallthru
      _
    // Predicated region
    $region34: #{lstm_state_estimation.1} parent=1 // pred_check
      _
    $region35: #{lstm_state_estimation.1} parent=1 // pred_check_branch
      %1038 = sbr.rel (0) target = $region37
    $region36: #{lstm_state_estimation.1} parent=1 // pred_region
      _
    $region37: #{lstm_state_estimation.1} parent=1 // pred_fallthru
      _
    %1039 = vsyncpa [#allocation4], 1

</llo_original>
